<compile_context>
chip_gen: v7x
topology: tpu7x:2x2x1
jax: 0.10.0
libtpu: 0.0.40
codegen_flags: <defaults>
</compile_context>

<pallas_src>
import functools

import jax
import jax.numpy as jnp
from jax.experimental import pallas as pl
from jax.experimental.pallas import tpu as pltpu


def lappe_kernel(x_ref, w1_ref, b1_ref, w2_ref, b2_ref, c0_ref, out_ref, *,
                 num_eigvecs, pe_dim):
    k_eig = num_eigvecs
    x = x_ref[...]                                      # (tn, 2K) f32  [eigvec | eigval]
    nan_x = jnp.isnan(x)
    lane = jax.lax.broadcasted_iota(jnp.int32, x.shape, 1)
    # Row mask counts NaNs in the eigvec lanes only (matches torch masked_fill_ on
    # mask_eig[:, :, 0]); eigval-only NaNs are zeroed in the input but their block stays.
    n_masked = jnp.sum(jnp.where(nan_x & (lane < k_eig), 1.0, 0.0),
                       axis=1, keepdims=True)           # (tn, 1)
    # pos_enc[mask_eig] = 0, then bf16 MXU operand (single-pass matmuls on every gen).
    x = jnp.where(nan_x, 0.0, x).astype(jnp.bfloat16)

    # linear_A for all K eigenvectors at once: (tn, 2K) @ (2K, K*2pe), lane-dense MXU.
    h = jnp.dot(x, w1_ref[...], preferred_element_type=jnp.float32) + b1_ref[...]
    h = jnp.maximum(h, 0.0).astype(jnp.bfloat16)        # activation, bf16 MXU operand

    # pe_encoder Linear, block-diagonal: (tn, K*2pe) @ (K*2pe, K*pe), lane-dense MXU.
    o = jnp.dot(h, w2_ref[...], preferred_element_type=jnp.float32) + b2_ref[...]
    o = jnp.maximum(o, 0.0)                             # (tn, K*pe) f32

    # k-collapse on the XLU: log2(K) lane rotations; afterwards lanes [0:pe) hold
    # sum_k o[:, k*pe + j].  MXU is the critical slot, XLU is idle -> near-free.
    shift = o.shape[-1] // 2
    while shift >= pe_dim:
        o = o + pltpu.roll(o, shift, axis=1)
        shift //= 2

    # Masked (eigvec==NaN) positions fed exactly (0,0) into the MLP, so each contributes
    # exactly c0 to the k-sum; subtract them (VPU) instead of an MXU mask-expander matmul.
    out_ref[...] = o[:, :pe_dim] - n_masked * c0_ref[...]


def _cdiv(a, b):
    return -(-a // b)


def _round_up(x, m):
    return ((x + m - 1) // m) * m


def _choose_tile(n, tile_n):
    """Pick a row-tile size: as large as tile_n, multiple of 8, and (for v7x) an even
    number of >= 2 grid steps whenever the graph spans more than one 8-row slab."""
    n8 = _round_up(max(n, 1), 8)
    n_tiles = max(2, 2 * _cdiv(n8, 2 * tile_n))
    tn = _round_up(_cdiv(n8, n_tiles), 8)
    return tn, _cdiv(n, tn)


def pack_lappe_params(w1, b1, w2, b2, num_eigvecs):
    """Precompute block-structured bf16 weights + the zero-input MLP constant c0.
    Call ONCE per weight set (hoisted out of the per-call forward path)."""
    k_eig = num_eigvecs
    two_pe = w1.shape[1]
    pe = w2.shape[1]
    if k_eig & (k_eig - 1):
        raise NotImplementedError("XLU roll-collapse needs a power-of-two eigvec count")

    eye_k = jnp.eye(k_eig, dtype=jnp.float32)
    w1_big = jnp.concatenate(
        [jnp.kron(eye_k, w1[0:1, :]),                    # eigvec channel rows
         jnp.kron(eye_k, w1[1:2, :])],                   # eigval channel rows
        axis=0)                                          # (2K, K*2pe)
    b1_big = jnp.tile(b1.reshape(1, two_pe), (1, k_eig)) # (1, K*2pe)
    w2_big = jnp.kron(eye_k, w2)                         # (K*2pe, K*pe) block-diagonal
    b2_big = jnp.tile(b2.reshape(1, pe), (1, k_eig))     # (1, K*pe)

    # MLP output for an all-zero (eigvec, eigval) pair, computed with the same
    # bf16-operand / f32-accumulate math as the kernel's MXU path.
    h0 = jnp.maximum(b1.reshape(1, two_pe), 0.0)
    c0 = jnp.maximum(
        jnp.dot(h0.astype(jnp.bfloat16), w2.astype(jnp.bfloat16),
                preferred_element_type=jnp.float32) + b2.reshape(1, pe), 0.0)  # (1, pe)

    return dict(w1_big=w1_big.astype(jnp.bfloat16), b1_big=b1_big,
                w2_big=w2_big.astype(jnp.bfloat16), b2_big=b2_big,
                c0=c0, num_eigvecs=k_eig, pe_dim=pe)


def lap_pe_forward(eigvals, eigvecs, params, *, tile_n=2048):
    N, K = eigvecs.shape
    assert K == params["num_eigvecs"]
    pe = params["pe_dim"]

    # Build the (N, 2K) [eigvec | eigval] slab.  The where() propagates eigvec-NaN into
    # the matching eigval lane so fully-masked (n,k) positions feed exactly (0,0) to the
    # MLP (required by the c0 subtraction; those positions are removed from the k-sum
    # anyway, so module semantics are unchanged).  XLA fuses the where into the concat
    # (one pass); the trailing-dim squeeze of eigvals is layout-only.  No tail padding:
    # the last grid block may be ragged -- rows are independent and out-of-range output
    # rows are dropped on writeback.
    vals2d = eigvals.reshape(N, K)
    vals2d = jnp.where(jnp.isnan(eigvecs), jnp.nan, vals2d)
    x = jnp.concatenate([eigvecs, vals2d], axis=1)       # (N, 2K) f32
    # TODO(synk): the remaining concat pass could move in-kernel (two inputs + minor-dim
    # concatenate) if it ever shows up next to the MXU-bound kernel on a profile.

    tn, grid = _choose_tile(N, tile_n)

    kernel = functools.partial(lappe_kernel, num_eigvecs=K, pe_dim=pe)
    out = pl.pallas_call(
        kernel,
        out_shape=jax.ShapeDtypeStruct((N, pe), jnp.float32),
        grid_spec=pltpu.PrefetchScalarGridSpec(
            num_scalar_prefetch=0,
            grid=(grid,),
            in_specs=[
                pl.BlockSpec((tn, 2 * K), lambda i: (i, 0)),
                pl.BlockSpec(params["w1_big"].shape, lambda i: (0, 0)),
                pl.BlockSpec(params["b1_big"].shape, lambda i: (0, 0)),
                pl.BlockSpec(params["w2_big"].shape, lambda i: (0, 0)),
                pl.BlockSpec(params["b2_big"].shape, lambda i: (0, 0)),
                pl.BlockSpec(params["c0"].shape, lambda i: (0, 0)),
            ],
            # NOTE(v5e): pe (<128) lanes -> masked vst; transposed (pe, tn) layout is the
            # measured-only fallback if the single vst slot ever becomes the bottleneck.
            out_specs=pl.BlockSpec((tn, pe), lambda i: (i, 0)),
        ),
        compiler_params=pltpu.CompilerParams(
            dimension_semantics=("parallel",)),
    )(x, params["w1_big"], params["b1_big"], params["w2_big"], params["b2_big"],
      params["c0"])
    return out


def lap_pe_ref(eigvals, eigvecs, w1, b1, w2, b2):
    # Pure-JAX mirror of the PyTorch forward (eval mode).  The two Linears cast their
    # operands to bf16 (with f32 accumulation) to match the kernel's single-pass MXU
    # precision; everything else (bias, ReLU, masking, k-sum) is f32.
    pos_enc = jnp.concatenate([eigvecs[:, :, None], eigvals], axis=2)   # (N, K, 2)
    mask = jnp.isnan(pos_enc)
    pos_enc = jnp.where(mask, 0.0, pos_enc)
    h = jnp.dot(pos_enc.astype(jnp.bfloat16), w1.astype(jnp.bfloat16),
                preferred_element_type=jnp.float32) + b1[0]
    h = jnp.maximum(h, 0.0)
    out = jnp.dot(h.astype(jnp.bfloat16), w2.astype(jnp.bfloat16),
                  preferred_element_type=jnp.float32) + b2[0]
    out = jnp.maximum(out, 0.0)
    out = jnp.where(mask[:, :, 0:1], 0.0, out)
    return jnp.sum(out, axis=1)


def _make_inputs(key, N, K, pe_dim):
    k1, k2, k3, k4, k5, k6 = jax.random.split(key, 6)
    w1 = jax.random.normal(k1, (2, 2 * pe_dim), jnp.float32) * 0.5
    b1 = jax.random.normal(k2, (1, 2 * pe_dim), jnp.float32) * 0.1
    w2 = jax.random.normal(k3, (2 * pe_dim, pe_dim), jnp.float32) * 0.2
    b2 = jax.random.normal(k4, (1, pe_dim), jnp.float32) * 0.1
    eigvecs = jax.random.normal(k5, (N, K), jnp.float32)
    eigvals = jax.random.uniform(k6, (N, K, 1), jnp.float32)
    # NaN padding on a couple of rows (PyG-style padded eigendecomposition).
    eigvecs = eigvecs.at[3, 5:].set(jnp.nan).at[N - 2, 6:].set(jnp.nan)
    eigvals = eigvals.at[3, 5:, 0].set(jnp.nan).at[N - 2, 6:, 0].set(jnp.nan)
    # One position where only the eigval is NaN (exercises the eigvec-only row mask).
    eigvals = eigvals.at[1, 2, 0].set(jnp.nan)
    return eigvals, eigvecs, w1, b1, w2, b2


if __name__ == "__main__":
    K, pe_dim = 8, 16
    key = jax.random.PRNGKey(0)
    keys = jax.random.split(key, 2)

    # Case 1: small graph, N multiple of 8 (grid of 2 even tiles).
    # Case 2: N not a multiple of the tile -> exercises the ragged-last-block path.
    for case_key, N in ((keys[0], 16), (keys[1], 50)):
        eigvals, eigvecs, w1, b1, w2, b2 = _make_inputs(case_key, N, K, pe_dim)

        params = pack_lappe_params(w1, b1, w2, b2, K)   # hoisted: once per weight set
        out = lap_pe_forward(eigvals, eigvecs, params)
        out = jax.block_until_ready(out)

        ref = lap_pe_ref(eigvals, eigvecs, w1, b1, w2, b2)
        assert out.shape == (N, pe_dim)
        assert bool(jnp.all(jnp.isfinite(out))), "NaN/inf leaked into output"
        assert jnp.allclose(out, ref, rtol=1e-3, atol=1e-3), f"mismatch vs reference (N={N})"

    print("KERNEL_OK")
</pallas_src>

<mosaic_0001>
module attributes {stable_mosaic.version = 11 : i64} {
  func.func @lappe_kernel(%arg0: i32, %arg1: memref<8x16xf32, #tpu.memory_space<vmem>>, %arg2: memref<16x256xbf16, #tpu.memory_space<vmem>>, %arg3: memref<1x256xf32, #tpu.memory_space<vmem>>, %arg4: memref<256x128xbf16, #tpu.memory_space<vmem>>, %arg5: memref<1x128xf32, #tpu.memory_space<vmem>>, %arg6: memref<1x16xf32, #tpu.memory_space<vmem>>, %arg7: memref<8x16xf32, #tpu.memory_space<vmem>>) attributes {dimension_semantics = [#tpu.dimension_semantics<parallel>], iteration_bounds = array<i64: 2>, scalar_prefetch = 0 : i64, scratch_operands = 0 : i64, tpu.core_type = #tpu.core_type<tc>, window_params = [{transform_indices = @transform_0, window_bounds = array<i64: 8, 16>}, {pipeline_mode = #tpu.pipeline_mode<synchronous>, transform_indices = @transform_1, window_bounds = array<i64: 16, 256>}, {pipeline_mode = #tpu.pipeline_mode<synchronous>, transform_indices = @transform_2, window_bounds = array<i64: 1, 256>}, {pipeline_mode = #tpu.pipeline_mode<synchronous>, transform_indices = @transform_3, window_bounds = array<i64: 256, 128>}, {pipeline_mode = #tpu.pipeline_mode<synchronous>, transform_indices = @transform_4, window_bounds = array<i64: 1, 128>}, {pipeline_mode = #tpu.pipeline_mode<synchronous>, transform_indices = @transform_5, window_bounds = array<i64: 1, 16>}, {transform_indices = @transform_6, window_bounds = array<i64: 8, 16>}]} {
    %c0 = arith.constant 0 : index
    %c0_0 = arith.constant 0 : index
    %0 = vector.load %arg1[%c0, %c0_0] : memref<8x16xf32, #tpu.memory_space<vmem>>, vector<8x16xf32>
    %1 = arith.cmpf one, %0, %0 : vector<8x16xf32>
    %2 = tpu.iota {dimensions = array<i32: 1>} : vector<8x16xi32>
    %c8_i32 = arith.constant 8 : i32
    %3 = vector.broadcast %c8_i32 : i32 to vector<8x16xi32>
    %4 = arith.cmpi slt, %2, %3 : vector<8x16xi32>
    %5 = arith.andi %1, %4 : vector<8x16xi1>
    %cst = arith.constant 1.000000e+00 : f32
    %cst_1 = arith.constant 0.000000e+00 : f32
    %6 = vector.broadcast %cst : f32 to vector<8x16xf32>
    %7 = vector.broadcast %cst_1 : f32 to vector<8x16xf32>
    %8 = arith.select %5, %6, %7 : vector<8x16xi1>, vector<8x16xf32>
    %cst_2 = arith.constant dense<0.000000e+00> : vector<8xf32>
    %9 = vector.multi_reduction <add>, %8, %cst_2 [1] : vector<8x16xf32> to vector<8xf32>
    %10 = vector.shape_cast %9 : vector<8xf32> to vector<8x1xf32>
    %cst_3 = arith.constant 0.000000e+00 : f32
    %11 = vector.broadcast %cst_3 : f32 to vector<8x16xf32>
    %12 = arith.select %1, %11, %0 : vector<8x16xi1>, vector<8x16xf32>
    %13 = arith.truncf %12 : vector<8x16xf32> to vector<8x16xbf16>
    %c0_4 = arith.constant 0 : index
    %c0_5 = arith.constant 0 : index
    %14 = vector.load %arg2[%c0_4, %c0_5] : memref<16x256xbf16, #tpu.memory_space<vmem>>, vector<16x256xbf16>
    %cst_6 = arith.constant dense<0.000000e+00> : vector<8x256xf32>
    %15 = tpu.matmul %13, %14, %cst_6 {dimension_numbers = #tpu.dot_dimension_numbers<[1], [0], [0], [1], [0, 0, 1, 1], [], []>} : vector<8x16xbf16>, vector<16x256xbf16>, vector<8x256xf32> -> vector<8x256xf32>
    %c0_7 = arith.constant 0 : index
    %c0_8 = arith.constant 0 : index
    %16 = vector.load %arg3[%c0_7, %c0_8] : memref<1x256xf32, #tpu.memory_space<vmem>>, vector<1x256xf32>
    %17 = vector.broadcast %16 : vector<1x256xf32> to vector<8x256xf32>
    %18 = arith.addf %15, %17 : vector<8x256xf32>
    %cst_9 = arith.constant 0.000000e+00 : f32
    %19 = vector.broadcast %cst_9 : f32 to vector<8x256xf32>
    %20 = arith.maximumf %18, %19 : vector<8x256xf32>
    %21 = arith.truncf %20 : vector<8x256xf32> to vector<8x256xbf16>
    %c0_10 = arith.constant 0 : index
    %c0_11 = arith.constant 0 : index
    %22 = vector.load %arg4[%c0_10, %c0_11] : memref<256x128xbf16, #tpu.memory_space<vmem>>, vector<256x128xbf16>
    %cst_12 = arith.constant dense<0.000000e+00> : vector<8x128xf32>
    %23 = tpu.matmul %21, %22, %cst_12 {dimension_numbers = #tpu.dot_dimension_numbers<[1], [0], [0], [1], [0, 0, 1, 1], [], []>} : vector<8x256xbf16>, vector<256x128xbf16>, vector<8x128xf32> -> vector<8x128xf32>
    %c0_13 = arith.constant 0 : index
    %c0_14 = arith.constant 0 : index
    %24 = vector.load %arg5[%c0_13, %c0_14] : memref<1x128xf32, #tpu.memory_space<vmem>>, vector<1x128xf32>
    %25 = vector.broadcast %24 : vector<1x128xf32> to vector<8x128xf32>
    %26 = arith.addf %23, %25 : vector<8x128xf32>
    %cst_15 = arith.constant 0.000000e+00 : f32
    %27 = vector.broadcast %cst_15 : f32 to vector<8x128xf32>
    %28 = arith.maximumf %26, %27 : vector<8x128xf32>
    %c64_i32 = arith.constant 64 : i32
    %29 = tpu.dynamic_rotate %28 by %c64_i32 dim 1 : vector<8x128xf32>, i32 -> vector<8x128xf32>
    %30 = arith.addf %28, %29 : vector<8x128xf32>
    %c32_i32 = arith.constant 32 : i32
    %31 = tpu.dynamic_rotate %30 by %c32_i32 dim 1 : vector<8x128xf32>, i32 -> vector<8x128xf32>
    %32 = arith.addf %30, %31 : vector<8x128xf32>
    %c16_i32 = arith.constant 16 : i32
    %33 = tpu.dynamic_rotate %32 by %c16_i32 dim 1 : vector<8x128xf32>, i32 -> vector<8x128xf32>
    %34 = arith.addf %32, %33 : vector<8x128xf32>
    %35 = vector.extract_strided_slice %34 {offsets = [0, 0], sizes = [8, 16], strides = [1, 1]} : vector<8x128xf32> to vector<8x16xf32>
    %c0_16 = arith.constant 0 : index
    %c0_17 = arith.constant 0 : index
    %36 = vector.load %arg6[%c0_16, %c0_17] : memref<1x16xf32, #tpu.memory_space<vmem>>, vector<1x16xf32>
    %37 = vector.broadcast %10 : vector<8x1xf32> to vector<8x16xf32>
    %38 = vector.broadcast %36 : vector<1x16xf32> to vector<8x16xf32>
    %39 = arith.mulf %37, %38 : vector<8x16xf32>
    %40 = arith.subf %35, %39 : vector<8x16xf32>
    %c0_18 = arith.constant 0 : index
    %c0_19 = arith.constant 0 : index
    %41 = vector.load %arg7[%c0_18, %c0_19] : memref<8x16xf32, #tpu.memory_space<vmem>>, vector<8x16xf32>
    tpu.vector_store %arg7[%c0_18, %c0_19], %40 {strides = array<i32>} : memref<8x16xf32, #tpu.memory_space<vmem>>, vector<8x16xf32>,
    return
  }
  func.func @transform_0(%arg0: i32) -> (i32, i32) {
    %c0_i32 = arith.constant 0 : i32
    %c0_i32_0 = arith.constant 0 : i32
    return %arg0, %c0_i32 : i32, i32
  }
  func.func @transform_1(%arg0: i32) -> (i32, i32) {
    %c0_i32 = arith.constant 0 : i32
    %c0_i32_0 = arith.constant 0 : i32
    %c0_i32_1 = arith.constant 0 : i32
    return %c0_i32, %c0_i32_0 : i32, i32
  }
  func.func @transform_2(%arg0: i32) -> (i32, i32) {
    %c0_i32 = arith.constant 0 : i32
    %c0_i32_0 = arith.constant 0 : i32
    %c0_i32_1 = arith.constant 0 : i32
    return %c0_i32, %c0_i32_0 : i32, i32
  }
  func.func @transform_3(%arg0: i32) -> (i32, i32) {
    %c0_i32 = arith.constant 0 : i32
    %c0_i32_0 = arith.constant 0 : i32
    %c0_i32_1 = arith.constant 0 : i32
    return %c0_i32, %c0_i32_0 : i32, i32
  }
  func.func @transform_4(%arg0: i32) -> (i32, i32) {
    %c0_i32 = arith.constant 0 : i32
    %c0_i32_0 = arith.constant 0 : i32
    %c0_i32_1 = arith.constant 0 : i32
    return %c0_i32, %c0_i32_0 : i32, i32
  }
  func.func @transform_5(%arg0: i32) -> (i32, i32) {
    %c0_i32 = arith.constant 0 : i32
    %c0_i32_0 = arith.constant 0 : i32
    %c0_i32_1 = arith.constant 0 : i32
    return %c0_i32, %c0_i32_0 : i32, i32
  }
  func.func @transform_6(%arg0: i32) -> (i32, i32) {
    %c0_i32 = arith.constant 0 : i32
    %c0_i32_0 = arith.constant 0 : i32
    return %arg0, %c0_i32 : i32, i32
  }
}

</mosaic_0001>

<llo_original>
// kernel: tpu_custom_call.1
$region0: #{tpu_custom_call.1}
  #allocation0 [shape = 'u32[]', space=smem, size = 0x4, offset = 0x4, fixed_abs, tag = 'smem constant byte address 0x4 - core index']
  #allocation1 [shape = 'u32[144,128]{1,0:T(1,128)}', space=vmem, size = 0x12000, scoped, tag = 'internal scratch']
  %s0 = inlined_call_operand.hbm [shape: f32[16,16], index: 0, kind: input, shape index: {}]
  %s1 = inlined_call_operand.hbm [shape: bf16[16,256], index: 1, kind: input, shape index: {}]
  %s2 = inlined_call_operand.vmem [shape: f32[1,256], index: 2, kind: input, shape index: {}]
  %s3 = inlined_call_operand.hbm [shape: bf16[256,128], index: 3, kind: input, shape index: {}]
  %s4 = inlined_call_operand.vmem [shape: f32[1,128], index: 4, kind: input, shape index: {}]
  %s5 = inlined_call_operand.vmem [shape: f32[1,16], index: 5, kind: input, shape index: {}]
  %s6 = inlined_call_operand.hbm [shape: f32[16,16], index: 6, kind: output, shape index: {}]
  %s7 = sld [smem:[#allocation0]]
  $region69: #{tpu_custom_call.1} parent=0
    _
  %s9 = ssub.s32 1, %s7
  %s10 = scalar_select 0, %s9, %s7
  $region1: #{tpu_custom_call.1} parent=0
    #allocation2 [shape = 'u8[8192]{0}', space=vmem, size = 0x2000, scoped, tag = 'input window, operand 0']
    #allocation3 [shape = 's32[2]{0}', space=sflag, size = 0x8, scoped, tag = 'scoped memory for tpu_custom_call.1']
    #allocation4 [shape = 's32[2]{0}', space=sflag, size = 0x8, scoped, tag = 'scoped memory for tpu_custom_call.1']
    #allocation5 [shape = 'u8[8192]{0}', space=vmem, size = 0x2000, scoped, tag = 'input window, operand 1, single buffered']
    #allocation6 [shape = 's32[1]{0}', space=sflag, size = 0x4, scoped, tag = 'scoped memory for tpu_custom_call.1']
    #allocation7 [shape = 'u8[65536]{0}', space=vmem, size = 0x10000, scoped, tag = 'input window, operand 3, single buffered']
    #allocation8 [shape = 'u8[8192]{0}', space=vmem, size = 0x2000, scoped, tag = 'output window, operand 0']
    %11 = vsyncpa [#allocation3], 0
    %s12 = scalar_lea.sflag [#allocation3], 1
    %13 = vsyncpa %s12, 0
    %14 = vsyncpa [#allocation6], 0
    %15 = vsyncpa [#allocation4], 0
    %s16 = scalar_lea.sflag [#allocation4], 1
    %17 = vsyncpa %s16, 0
    loop: start=0, step=1, limit=4
    $region2: #{tpu_custom_call.1} parent=1 // loop_pre_header
      _
    $region3: #{tpu_custom_call.1} parent=1 // loop_header
      %s19 = sphi 0, %s23
      %p20 = scmp.ge.s32.totalorder %s19, 4
      %s29 = sphi 0, %s31
      %s32 = sphi 0, %s29
      %s33 = sphi 0, %s32
      %s49 = sphi 0, %s33
      %s53 = sphi 0, %s53
      %s55 = sphi 0, %s53
      %s56 = sphi 0, %s55
      %s70 = sphi 0, %s56
      %s74 = sphi 0, %s74
      %s76 = sphi 0, %s74
      %s77 = sphi 0, %s76
      %s91 = sphi 0, %s77
      %s95 = sphi 0, %s95
      %s97 = sphi 0, %s95
      %s98 = sphi 0, %s97
      %s112 = sphi 0, %s98
      %s116 = sphi 0, %s116
      %s118 = sphi 0, %s116
      %s119 = sphi 0, %s118
      %s133 = sphi 0, %s119
      %s137 = sphi 0, %s137
      %s139 = sphi 0, %s137
      %s140 = sphi 0, %s139
      %s154 = sphi 0, %s140
      %s160 = sphi 0, %s162
      %s163 = sphi 0, %s160
      %s164 = sphi 0, %s163
      %s180 = sphi 0, %s164
    $region4: #{tpu_custom_call.1} parent=1 // loop_header_branch
      %22 = sbr.rel (%p20) target = $region8
    $region5: #{tpu_custom_call.1} parent=1 // loop_body
      %s24 = ssub.s32 %s19, 1
      %s25 = ssub.s32 %s19, 2
      %s26 = sadd.s32 %s19, 1
      %s27 = ssub.s32 %s19, %s26
      %p28 = scmp.eq.s32.totalorder %s27, 0
      %s30 = sadd.s32 %s29, 1
      %s31 = scalar_select %p28, %s29, %s30
      %p34 = pneg %p28
      %p35 = scmp.eq.s32.totalorder %s19, 1
      %p36 = por %p34, %p35
      %p37 = scmp.ne.s32.totalorder %s29, %s32
      %p38 = scmp.eq.s32.totalorder %s19, 0
      %p39 = por %p37, %p38
      %p40 = scmp.ne.s32.totalorder %s29, %s32
      %p41 = scmp.eq.s32.totalorder %s24, 1
      %p42 = por %p40, %p41
      %p43 = scmp.ne.s32.totalorder %s32, %s33
      %p44 = scmp.eq.s32.totalorder %s24, 0
      %p45 = por %p43, %p44
      %p46 = scmp.ne.s32.totalorder %s32, %s33
      %p47 = scmp.eq.s32.totalorder %s25, 1
      %p48 = por %p46, %p47
      %p50 = scmp.ne.s32.totalorder %s33, %s49
      %p51 = scmp.eq.s32.totalorder %s25, 0
      %p52 = por %p50, %p51
      %s54 = sadd.s32 %s53, 1
      %p57 = scmp.eq.s32.totalorder %s19, 1
      %p58 = scmp.ne.s32.totalorder %s53, %s55
      %p59 = scmp.eq.s32.totalorder %s19, 0
      %p60 = por %p58, %p59
      %p61 = scmp.ne.s32.totalorder %s53, %s55
      %p62 = scmp.eq.s32.totalorder %s24, 1
      %p63 = por %p61, %p62
      %p64 = scmp.ne.s32.totalorder %s55, %s56
      %p65 = scmp.eq.s32.totalorder %s24, 0
      %p66 = por %p64, %p65
      %p67 = scmp.ne.s32.totalorder %s55, %s56
      %p68 = scmp.eq.s32.totalorder %s25, 1
      %p69 = por %p67, %p68
      %p71 = scmp.ne.s32.totalorder %s56, %s70
      %p72 = scmp.eq.s32.totalorder %s25, 0
      %p73 = por %p71, %p72
      %s75 = sadd.s32 %s74, 1
      %p78 = scmp.eq.s32.totalorder %s19, 1
      %p79 = scmp.ne.s32.totalorder %s74, %s76
      %p80 = scmp.eq.s32.totalorder %s19, 0
      %p81 = por %p79, %p80
      %p82 = scmp.ne.s32.totalorder %s74, %s76
      %p83 = scmp.eq.s32.totalorder %s24, 1
      %p84 = por %p82, %p83
      %p85 = scmp.ne.s32.totalorder %s76, %s77
      %p86 = scmp.eq.s32.totalorder %s24, 0
      %p87 = por %p85, %p86
      %p88 = scmp.ne.s32.totalorder %s76, %s77
      %p89 = scmp.eq.s32.totalorder %s25, 1
      %p90 = por %p88, %p89
      %p92 = scmp.ne.s32.totalorder %s77, %s91
      %p93 = scmp.eq.s32.totalorder %s25, 0
      %p94 = por %p92, %p93
      %s96 = sadd.s32 %s95, 1
      %p99 = scmp.eq.s32.totalorder %s19, 1
      %p100 = scmp.ne.s32.totalorder %s95, %s97
      %p101 = scmp.eq.s32.totalorder %s19, 0
      %p102 = por %p100, %p101
      %p103 = scmp.ne.s32.totalorder %s95, %s97
      %p104 = scmp.eq.s32.totalorder %s24, 1
      %p105 = por %p103, %p104
      %p106 = scmp.ne.s32.totalorder %s97, %s98
      %p107 = scmp.eq.s32.totalorder %s24, 0
      %p108 = por %p106, %p107
      %p109 = scmp.ne.s32.totalorder %s97, %s98
      %p110 = scmp.eq.s32.totalorder %s25, 1
      %p111 = por %p109, %p110
      %p113 = scmp.ne.s32.totalorder %s98, %s112
      %p114 = scmp.eq.s32.totalorder %s25, 0
      %p115 = por %p113, %p114
      %s117 = sadd.s32 %s116, 1
      %p120 = scmp.eq.s32.totalorder %s19, 1
      %p121 = scmp.ne.s32.totalorder %s116, %s118
      %p122 = scmp.eq.s32.totalorder %s19, 0
      %p123 = por %p121, %p122
      %p124 = scmp.ne.s32.totalorder %s116, %s118
      %p125 = scmp.eq.s32.totalorder %s24, 1
      %p126 = por %p124, %p125
      %p127 = scmp.ne.s32.totalorder %s118, %s119
      %p128 = scmp.eq.s32.totalorder %s24, 0
      %p129 = por %p127, %p128
      %p130 = scmp.ne.s32.totalorder %s118, %s119
      %p131 = scmp.eq.s32.totalorder %s25, 1
      %p132 = por %p130, %p131
      %p134 = scmp.ne.s32.totalorder %s119, %s133
      %p135 = scmp.eq.s32.totalorder %s25, 0
      %p136 = por %p134, %p135
      %s138 = sadd.s32 %s137, 1
      %p141 = scmp.eq.s32.totalorder %s19, 1
      %p142 = scmp.ne.s32.totalorder %s137, %s139
      %p143 = scmp.eq.s32.totalorder %s19, 0
      %p144 = por %p142, %p143
      %p145 = scmp.ne.s32.totalorder %s137, %s139
      %p146 = scmp.eq.s32.totalorder %s24, 1
      %p147 = por %p145, %p146
      %p148 = scmp.ne.s32.totalorder %s139, %s140
      %p149 = scmp.eq.s32.totalorder %s24, 0
      %p150 = por %p148, %p149
      %p151 = scmp.ne.s32.totalorder %s139, %s140
      %p152 = scmp.eq.s32.totalorder %s25, 1
      %p153 = por %p151, %p152
      %p155 = scmp.ne.s32.totalorder %s140, %s154
      %p156 = scmp.eq.s32.totalorder %s25, 0
      %p157 = por %p155, %p156
      %s158 = ssub.s32 %s19, %s26
      %p159 = scmp.eq.s32.totalorder %s158, 0
      %s161 = sadd.s32 %s160, 1
      %s162 = scalar_select %p159, %s160, %s161
      %p165 = pneg %p159
      %p166 = scmp.eq.s32.totalorder %s19, 1
      %p167 = por %p165, %p166
      %p168 = scmp.ne.s32.totalorder %s160, %s163
      %p169 = scmp.eq.s32.totalorder %s19, 0
      %p170 = por %p168, %p169
      %p171 = scmp.ne.s32.totalorder %s160, %s163
      %p172 = scmp.eq.s32.totalorder %s24, 1
      %p173 = por %p171, %p172
      %p174 = scmp.ne.s32.totalorder %s163, %s164
      %p175 = scmp.eq.s32.totalorder %s24, 0
      %p176 = por %p174, %p175
      %p177 = scmp.ne.s32.totalorder %s163, %s164
      %p178 = scmp.eq.s32.totalorder %s25, 1
      %p179 = por %p177, %p178
      %p181 = scmp.ne.s32.totalorder %s164, %s180
      %p182 = scmp.eq.s32.totalorder %s25, 0
      %p183 = por %p181, %p182
      %p184 = scmp.le.s32.totalorder 1, %s19
      %p185 = scmp.lt.s32.totalorder %s19, 3
      %p186 = pnand %p184, %p185
      %p187 = pneg %p186
      // Predicated region
      $region9: #{tpu_custom_call.1} parent=5 // pred_check
        _
      $region10: #{tpu_custom_call.1} parent=5 // pred_check_branch
        %189 = sbr.rel (%p186) target = $region12
      $region11: #{tpu_custom_call.1} parent=5 // pred_region
        %s190 = ssub.s32 %s19, 1
        // Predicated region
        $region13: #{tpu_custom_call.1} parent=11 // pred_check
          %p191 = pneg %p66
        $region14: #{tpu_custom_call.1} parent=11 // pred_check_branch
          %193 = sbr.rel (%p191) target = $region16
        $region15: #{tpu_custom_call.1} parent=11 // pred_region
          %s195 = ssub.s32 256, 256
          %196 = vsyncadd [#allocation6], %s195
          %s197 = sshll.u32 [#allocation5], 4
          %s198 = int_to_ptr.vmem [resolvable:$true] %s197
          %203 = dma.hbm_to_vmem [thread:$0]  %s1, 256, %s198, [#allocation6], 128, 128, 8
        $region16: #{tpu_custom_call.1} parent=11 // pred_fallthru
          _
        // Predicated region
        $region17: #{tpu_custom_call.1} parent=11 // pred_check
          %p204 = pneg %p87
        $region18: #{tpu_custom_call.1} parent=11 // pred_check_branch
          %206 = sbr.rel (%p204) target = $region20
        $region19: #{tpu_custom_call.1} parent=11 // pred_region
          _
        $region20: #{tpu_custom_call.1} parent=11 // pred_fallthru
          _
        // Predicated region
        $region21: #{tpu_custom_call.1} parent=11 // pred_check
          %p207 = pneg %p108
        $region22: #{tpu_custom_call.1} parent=11 // pred_check_branch
          %209 = sbr.rel (%p207) target = $region24
        $region23: #{tpu_custom_call.1} parent=11 // pred_region
          %s211 = ssub.s32 2048, 2048
          %212 = vsyncadd [#allocation6], %s211
          %s213 = sshll.u32 [#allocation7], 4
          %s214 = int_to_ptr.vmem [resolvable:$true] %s213
          %219 = dma.hbm_to_vmem [thread:$0]  %s3, 2048, %s214, [#allocation6], 64, 64, 4
        $region24: #{tpu_custom_call.1} parent=11 // pred_fallthru
          _
        // Predicated region
        $region25: #{tpu_custom_call.1} parent=11 // pred_check
          %p220 = pneg %p129
        $region26: #{tpu_custom_call.1} parent=11 // pred_check_branch
          %222 = sbr.rel (%p220) target = $region28
        $region27: #{tpu_custom_call.1} parent=11 // pred_region
          _
        $region28: #{tpu_custom_call.1} parent=11 // pred_fallthru
          _
        // Predicated region
        $region29: #{tpu_custom_call.1} parent=11 // pred_check
          %p223 = pneg %p150
        $region30: #{tpu_custom_call.1} parent=11 // pred_check_branch
          %225 = sbr.rel (%p223) target = $region32
        $region31: #{tpu_custom_call.1} parent=11 // pred_region
          _
        $region32: #{tpu_custom_call.1} parent=11 // pred_fallthru
          _
      $region12: #{tpu_custom_call.1} parent=5 // pred_fallthru
        _
      %p226 = scmp.lt.s32.totalorder %s19, 2
      // Predicated region
      $region33: #{tpu_custom_call.1} parent=5 // pred_check
        %p227 = pneg %p226
      $region34: #{tpu_custom_call.1} parent=5 // pred_check_branch
        %229 = sbr.rel (%p227) target = $region36
      $region35: #{tpu_custom_call.1} parent=5 // pred_region
        // Predicated region
        $region37: #{tpu_custom_call.1} parent=35 // pred_check
          %p230 = pneg %p39
        $region38: #{tpu_custom_call.1} parent=35 // pred_check_branch
          %232 = sbr.rel (%p230) target = $region40
        $region39: #{tpu_custom_call.1} parent=35 // pred_region
          %s233 = sand.u32 %s29, 1
          %s234 = scalar_lea.sflag [#allocation3], %s233
          %s235 = sand.u32 %s29, 1
          %s236 = smul.addr %s235, 8
          %s237 = scalar_lea.vmem [#allocation2], %s236
          %s239 = ssub.s32 128, 128
          %240 = vsyncadd %s234, %s239
          %s241 = smul.addr %s19, 128
          %s242 = scalar_lea.hbm %s0, %s241
          %s244 = sshll.u32 %s237, 4
          %s245 = int_to_ptr.vmem [resolvable:$true] %s244
          %247 = dma.hbm_to_vmem [thread:$0]  %s242, 128, %s245, %s234
        $region40: #{tpu_custom_call.1} parent=35 // pred_fallthru
          _
      $region36: #{tpu_custom_call.1} parent=5 // pred_fallthru
        _
      %p248 = scmp.le.s32.totalorder 1, %s19
      %p249 = scmp.lt.s32.totalorder %s19, 3
      %p250 = pnand %p248, %p249
      %p251 = pneg %p250
      // Predicated region
      $region41: #{tpu_custom_call.1} parent=5 // pred_check
        _
      $region42: #{tpu_custom_call.1} parent=5 // pred_check_branch
        %253 = sbr.rel (%p250) target = $region44
      $region43: #{tpu_custom_call.1} parent=5 // pred_region
        %s254 = ssub.s32 %s19, 1
        %s255 = sand.u32 %s32, 1
        %s256 = scalar_lea.sflag [#allocation3], %s255
        %s257 = sand.u32 %s32, 1
        %s258 = smul.addr %s257, 8
        %s259 = scalar_lea.vmem [#allocation2], %s258
        // Predicated region
        $region45: #{tpu_custom_call.1} parent=43 // pred_check
          %p260 = pneg %p45
        $region46: #{tpu_custom_call.1} parent=43 // pred_check_branch
          %262 = sbr.rel (%p260) target = $region48
        $region47: #{tpu_custom_call.1} parent=43 // pred_region
          %263 = dma.done %s256, 128
        $region48: #{tpu_custom_call.1} parent=43 // pred_fallthru
          _
        // Predicated region
        $region49: #{tpu_custom_call.1} parent=43 // pred_check
          %p264 = pneg %p66
        $region50: #{tpu_custom_call.1} parent=43 // pred_check_branch
          %266 = sbr.rel (%p264) target = $region52
        $region51: #{tpu_custom_call.1} parent=43 // pred_region
          %267 = dma.done [#allocation6], 256
        $region52: #{tpu_custom_call.1} parent=43 // pred_fallthru
          _
        // Predicated region
        $region53: #{tpu_custom_call.1} parent=43 // pred_check
          %p268 = pneg %p108
        $region54: #{tpu_custom_call.1} parent=43 // pred_check_branch
          %270 = sbr.rel (%p268) target = $region56
        $region55: #{tpu_custom_call.1} parent=43 // pred_region
          %271 = dma.done [#allocation6], 2048
        $region56: #{tpu_custom_call.1} parent=43 // pred_fallthru
          _
        %s272 = sand.u32 %s32, 1
        %s273 = scalar_lea.sflag [#allocation3], %s272
        %s274 = sand.u32 %s32, 1
        %s275 = smul.addr %s274, 8
        %s276 = scalar_lea.vmem [#allocation2], %s275
        %p277 = pneg %p45
        %p278 = pneg %p42
        %p279 = pneg %p66
        %p280 = pneg %p63
        %p281 = pneg %p87
        %p282 = pneg %p84
        %p283 = pneg %p108
        %p284 = pneg %p105
        %p285 = pneg %p129
        %p286 = pneg %p126
        %p287 = pneg %p150
        %p288 = pneg %p147
        %p289 = pneg %p176
        %p290 = pneg %p173
        %s291 = sand.u32 %s163, 1
        %s292 = scalar_lea.sflag [#allocation4], %s291
        %s293 = sand.u32 %s163, 1
        %s294 = smul.addr %s293, 8
        %s295 = scalar_lea.vmem [#allocation8], %s294
        %v297 = vld [vmem:[%s259] sm:$0xff]
        %vm298 = vcmp.ne.f32.partialorder %v297, %v297
        %v299 = vlaneseq
        %v300 = vand.u32 %v299, 127
        %vm301 = vcmp.lt.s32.totalorder %v300, 8
        %vm302 = vmand %vm298, %vm301
        %v303 = vsel %vm302, 1.0, 0.0
        %vm304 = vcmask 130048
        %v305 = vsel %vm304, %v303, 0.0
        %306 = vadd.xlane.f32.xlu0 %v305
        %v307 = vpop.xlane.xlu0 %306
        %v308 = vsel %vm298, 0.0, %v297
        %v309 = vpack.c.bf16 %v308, %v308
        %v310 = vld [vmem:[#allocation5] sm:$0xff]
        %v311 = vld [vmem:[#allocation5 + $0x8] sm:$0xff]
        %v312 = vld [vmem:[%s2] sm:$0x3]
        %v314 = vlaneseq
        %v315 = vshrl.u32 %v314, 7
        %v316 = vsub.s32 0, %v315
        %v317 = vrot.slane %v312, %v316
        %v318 = vlaneseq
        %v319 = vshrl.u32 %v318, 7
        %v320 = vsub.s32 1, %v319
        %v321 = vrot.slane %v312, %v320
        %v326 = vunpack.c.l.b16 %v310
        %v327 = vunpack.c.h.b16 %v310
        %v328 = vunpack.c.l.b16 %v311
        %v329 = vunpack.c.h.b16 %v311
        %v330 = vpack.c.b16 %v328, %v326
        %v331 = vpack.c.b16 %v329, %v327
        %v335 = vsel %vm304, %v309, 0
        %337 = vmatprep.subr.bf16.mxu0 %v331
        %338 = vmatpush1.bf16.msra.mxu0 %v330
        %339 = vmatprep.subr.bf16.mxu0 0
        %340 = vmatpush1.bf16.msra.mxu0 0
        %341 = vmatprep.subr.bf16.mxu0 0
        %342 = vmatpush1.bf16.msra.mxu0 0
        %343 = vmatprep.subr.bf16.mxu0 0
        %344 = vmatpush1.bf16.msra.mxu0 0
        %345 = vmatprep.subr.bf16.mxu0 0
        %346 = vmatpush1.bf16.msra.mxu0 0
        %347 = vmatprep.subr.bf16.mxu0 0
        %348 = vmatpush1.bf16.msra.mxu0 0
        %349 = vmatprep.subr.bf16.mxu0 0
        %350 = vmatpush1.bf16.msra.mxu0 0
        %351 = vmatprep.subr.bf16.mxu0 0
        %352 = vmatpush1.bf16.msra.mxu0 0
        %353 = vmatprep.subr.bf16.mxu0 0
        %354 = vmatpush1.bf16.msra.mxu0 0
        %355 = vmatprep.subr.bf16.mxu0 0
        %356 = vmatpush1.bf16.msra.mxu0 0
        %357 = vmatprep.subr.bf16.mxu0 0
        %358 = vmatpush1.bf16.msra.mxu0 0
        %359 = vmatprep.subr.bf16.mxu0 0
        %360 = vmatpush1.bf16.msra.mxu0 0
        %361 = vmatprep.subr.bf16.mxu0 0
        %362 = vmatpush1.bf16.msra.mxu0 0
        %363 = vmatprep.subr.bf16.mxu0 0
        %364 = vmatpush1.bf16.msra.mxu0 0
        %365 = vmatprep.subr.bf16.mxu0 0
        %366 = vmatpush1.bf16.msra.mxu0 0
        %367 = vmatprep.subr.bf16.mxu0 0
        %368 = vmatpush1.bf16.msra.mxu0 0
        %369 = vmatprep.mubr.bf16.mxu0 0
        %370 = vmatmul.mubr.bf16.gmra.mrb[0].mxu0 %v335
        %v371 = vpop.f32.mrb[0].mxu0
        %v372 = vadd.f32 %v317, %v371
        %v373 = vpop.f32.mrb[0].mxu0
        %v374 = vadd.f32 %v321, %v373
        %v375 = vpop.f32.mrb[0].mxu0
        %v376 = vpop.f32.mrb[0].mxu0
        %377 = vdwg.mxu0
        %v378 = vmax.f32 %v372, 0.0
        %v379 = vmax.f32 %v374, 0.0
        %v380 = vpack.c.bf16 %v378, %v378
        %v381 = vpack.c.bf16 %v379, %v379
        %v382 = vld [vmem:[#allocation7] sm:$0xf]
        %v383 = vld [vmem:[#allocation7 + $0x4] sm:$0xf]
        %v384 = vld [vmem:[#allocation7 + $0x8] sm:$0xf]
        %v385 = vld [vmem:[#allocation7 + $0xc] sm:$0xf]
        %v386 = vld [vmem:[#allocation7 + $0x10] sm:$0xf]
        %v387 = vld [vmem:[#allocation7 + $0x14] sm:$0xf]
        %v388 = vld [vmem:[#allocation7 + $0x18] sm:$0xf]
        %v389 = vld [vmem:[#allocation7 + $0x1c] sm:$0xf]
        %v390 = vld [vmem:[#allocation7 + $0x20] sm:$0xf]
        %v391 = vld [vmem:[#allocation7 + $0x24] sm:$0xf]
        %v392 = vld [vmem:[#allocation7 + $0x28] sm:$0xf]
        %v393 = vld [vmem:[#allocation7 + $0x2c] sm:$0xf]
        %v394 = vld [vmem:[#allocation7 + $0x30] sm:$0xf]
        %v395 = vld [vmem:[#allocation7 + $0x34] sm:$0xf]
        %v396 = vld [vmem:[#allocation7 + $0x38] sm:$0xf]
        %v397 = vld [vmem:[#allocation7 + $0x3c] sm:$0xf]
        %v398 = vld [vmem:[#allocation7 + $0x40] sm:$0xf]
        %v399 = vld [vmem:[#allocation7 + $0x44] sm:$0xf]
        %v400 = vld [vmem:[#allocation7 + $0x48] sm:$0xf]
        %v401 = vld [vmem:[#allocation7 + $0x4c] sm:$0xf]
        %v402 = vld [vmem:[#allocation7 + $0x50] sm:$0xf]
        %v403 = vld [vmem:[#allocation7 + $0x54] sm:$0xf]
        %v404 = vld [vmem:[#allocation7 + $0x58] sm:$0xf]
        %v405 = vld [vmem:[#allocation7 + $0x5c] sm:$0xf]
        %v406 = vld [vmem:[#allocation7 + $0x60] sm:$0xf]
        %v407 = vld [vmem:[#allocation7 + $0x64] sm:$0xf]
        %v408 = vld [vmem:[#allocation7 + $0x68] sm:$0xf]
        %v409 = vld [vmem:[#allocation7 + $0x6c] sm:$0xf]
        %v410 = vld [vmem:[#allocation7 + $0x70] sm:$0xf]
        %v411 = vld [vmem:[#allocation7 + $0x74] sm:$0xf]
        %v412 = vld [vmem:[#allocation7 + $0x78] sm:$0xf]
        %v413 = vld [vmem:[#allocation7 + $0x7c] sm:$0xf]
        %v414 = vld [vmem:[%s4] sm:$0x1]
        %v416 = vlaneseq
        %v417 = vshrl.u32 %v416, 7
        %v418 = vsub.s32 0, %v417
        %v419 = vrot.slane %v414, %v418
        %v453 = vunpack.c.l.b16 %v382
        %v454 = vunpack.c.l.b16 %v383
        %v455 = vunpack.c.l.b16 %v384
        %v456 = vunpack.c.l.b16 %v385
        %v457 = vunpack.c.l.b16 %v386
        %v458 = vunpack.c.l.b16 %v387
        %v459 = vunpack.c.l.b16 %v388
        %v460 = vunpack.c.l.b16 %v389
        %v461 = vunpack.c.l.b16 %v390
        %v462 = vunpack.c.l.b16 %v391
        %v463 = vunpack.c.l.b16 %v392
        %v464 = vunpack.c.l.b16 %v393
        %v465 = vunpack.c.l.b16 %v394
        %v466 = vunpack.c.l.b16 %v395
        %v467 = vunpack.c.l.b16 %v396
        %v468 = vunpack.c.l.b16 %v397
        %v469 = vunpack.c.l.b16 %v398
        %v470 = vunpack.c.l.b16 %v399
        %v471 = vunpack.c.l.b16 %v400
        %v472 = vunpack.c.l.b16 %v401
        %v473 = vunpack.c.l.b16 %v402
        %v474 = vunpack.c.l.b16 %v403
        %v475 = vunpack.c.l.b16 %v404
        %v476 = vunpack.c.l.b16 %v405
        %v477 = vunpack.c.l.b16 %v406
        %v478 = vunpack.c.l.b16 %v407
        %v479 = vunpack.c.l.b16 %v408
        %v480 = vunpack.c.l.b16 %v409
        %v481 = vunpack.c.l.b16 %v410
        %v482 = vunpack.c.l.b16 %v411
        %v483 = vunpack.c.l.b16 %v412
        %v484 = vunpack.c.l.b16 %v413
        %v485 = vpack.c.b16 %v454, %v453
        %v486 = vpack.c.b16 %v456, %v455
        %v487 = vpack.c.b16 %v458, %v457
        %v488 = vpack.c.b16 %v460, %v459
        %v489 = vpack.c.b16 %v462, %v461
        %v490 = vpack.c.b16 %v464, %v463
        %v491 = vpack.c.b16 %v466, %v465
        %v492 = vpack.c.b16 %v468, %v467
        %v493 = vpack.c.b16 %v470, %v469
        %v494 = vpack.c.b16 %v472, %v471
        %v495 = vpack.c.b16 %v474, %v473
        %v496 = vpack.c.b16 %v476, %v475
        %v497 = vpack.c.b16 %v478, %v477
        %v498 = vpack.c.b16 %v480, %v479
        %v499 = vpack.c.b16 %v482, %v481
        %v500 = vpack.c.b16 %v484, %v483
        %517 = vmatprep.subr.bf16.mxu0 0
        %518 = vmatpush1.bf16.msra.mxu0 %v485
        %519 = vmatprep.subr.bf16.mxu0 0
        %520 = vmatpush1.bf16.msra.mxu0 %v486
        %521 = vmatprep.subr.bf16.mxu0 0
        %522 = vmatpush1.bf16.msra.mxu0 %v487
        %523 = vmatprep.subr.bf16.mxu0 0
        %524 = vmatpush1.bf16.msra.mxu0 %v488
        %525 = vmatprep.subr.bf16.mxu0 0
        %526 = vmatpush1.bf16.msra.mxu0 %v489
        %527 = vmatprep.subr.bf16.mxu0 0
        %528 = vmatpush1.bf16.msra.mxu0 %v490
        %529 = vmatprep.subr.bf16.mxu0 0
        %530 = vmatpush1.bf16.msra.mxu0 %v491
        %531 = vmatprep.subr.bf16.mxu0 0
        %532 = vmatpush1.bf16.msra.mxu0 %v492
        %533 = vmatprep.subr.bf16.mxu0 0
        %534 = vmatpush1.bf16.msra.mxu0 %v493
        %535 = vmatprep.subr.bf16.mxu0 0
        %536 = vmatpush1.bf16.msra.mxu0 %v494
        %537 = vmatprep.subr.bf16.mxu0 0
        %538 = vmatpush1.bf16.msra.mxu0 %v495
        %539 = vmatprep.subr.bf16.mxu0 0
        %540 = vmatpush1.bf16.msra.mxu0 %v496
        %541 = vmatprep.subr.bf16.mxu0 0
        %542 = vmatpush1.bf16.msra.mxu0 %v497
        %543 = vmatprep.subr.bf16.mxu0 0
        %544 = vmatpush1.bf16.msra.mxu0 %v498
        %545 = vmatprep.subr.bf16.mxu0 0
        %546 = vmatpush1.bf16.msra.mxu0 %v499
        %547 = vmatprep.subr.bf16.mxu0 0
        %548 = vmatpush1.bf16.msra.mxu0 %v500
        %549 = vmatprep.mubr.bf16.mxu0 %v381
        %550 = vmatmul.mubr.bf16.gmra.mrb[0].mxu0 %v380
        %v551 = vpop.f32.mrb[0].mxu0
        %v552 = vadd.f32 %v419, %v551
        %v553 = vpop.f32.mrb[0].mxu0
        %v554 = vpop.f32.mrb[0].mxu0
        %v555 = vpop.f32.mrb[0].mxu0
        %556 = vdwg.mxu0
        %v557 = vmax.f32 %v552, 0.0
        %558 = vrot.lane.b32.xlu0 %v557, 64
        %v559 = vpop.permute.xlu0 %558
        %v560 = vadd.f32 %v557, %v559
        %561 = vrot.lane.b32.xlu0 %v560, 32
        %v562 = vpop.permute.xlu0 %561
        %v563 = vadd.f32 %v560, %v562
        %564 = vrot.lane.b32.xlu0 %v563, 16
        %v565 = vpop.permute.xlu0 %564
        %v566 = vadd.f32 %v563, %v565
        %v567 = vld [vmem:[%s5] sm:$0x1]
        %v569 = vlaneseq
        %v570 = vshrl.u32 %v569, 7
        %v571 = vsub.s32 0, %v570
        %v572 = vrot.slane %v567, %v571
        %v574 = vmul.f32 %v307, %v572
        %v575 = vsub.f32 %v566, %v574
        %576 = vst.msk [vmem:[%s295] sm:$0xff] %vm304, %v575
        %s577 = sand.u32 %s163, 1
        %s578 = scalar_lea.sflag [#allocation4], %s577
        %s579 = sand.u32 %s163, 1
        %s580 = smul.addr %s579, 8
        %s581 = scalar_lea.vmem [#allocation8], %s580
        // Predicated region
        $region57: #{tpu_custom_call.1} parent=43 // pred_check
          %p582 = pneg %p173
        $region58: #{tpu_custom_call.1} parent=43 // pred_check_branch
          %584 = sbr.rel (%p582) target = $region60
        $region59: #{tpu_custom_call.1} parent=43 // pred_region
          %s586 = ssub.s32 128, 128
          %587 = vsyncadd %s578, %s586
          %s588 = smul.addr %s24, 128
          %s589 = scalar_lea.hbm %s6, %s588
          %s591 = sshll.u32 %s581, 4
          %s592 = int_to_ptr.vmem [resolvable:$true] %s591
          %594 = dma.vmem_to_hbm [thread:$0]  %s592, 128, %s589, %s578
        $region60: #{tpu_custom_call.1} parent=43 // pred_fallthru
          _
      $region44: #{tpu_custom_call.1} parent=5 // pred_fallthru
        _
      %p595 = scmp.le.s32.totalorder 2, %s19
      // Predicated region
      $region61: #{tpu_custom_call.1} parent=5 // pred_check
        %p596 = pneg %p595
      $region62: #{tpu_custom_call.1} parent=5 // pred_check_branch
        %598 = sbr.rel (%p596) target = $region64
      $region63: #{tpu_custom_call.1} parent=5 // pred_region
        %s599 = ssub.s32 %s19, 2
        // Predicated region
        $region65: #{tpu_custom_call.1} parent=63 // pred_check
          %p600 = pneg %p179
        $region66: #{tpu_custom_call.1} parent=63 // pred_check_branch
          %602 = sbr.rel (%p600) target = $region68
        $region67: #{tpu_custom_call.1} parent=63 // pred_region
          %s603 = sand.u32 %s164, 1
          %s604 = scalar_lea.sflag [#allocation4], %s603
          %s605 = sand.u32 %s164, 1
          %s606 = smul.addr %s605, 8
          %s607 = scalar_lea.vmem [#allocation8], %s606
          %608 = dma.done %s604, 128
        $region68: #{tpu_custom_call.1} parent=63 // pred_fallthru
          _
      $region64: #{tpu_custom_call.1} parent=5 // pred_fallthru
        _
    $region6: #{tpu_custom_call.1} parent=1 // loop_footer
      %s23 = sadd.s32 1, %s19
    $region7: #{tpu_custom_call.1} parent=1 // loop_footer_branch
      %18 = sbr.rel target = $region3
    $region8: #{tpu_custom_call.1} parent=1 // loop_exit
      _
    %609 = vsyncpa [#allocation3], 1
    %s610 = scalar_lea.sflag [#allocation3], 1
    %611 = vsyncpa %s610, 1
    %612 = vsyncpa [#allocation6], 1
    %613 = vsyncpa [#allocation4], 1
    %s614 = scalar_lea.sflag [#allocation4], 1
    %615 = vsyncpa %s614, 1

</llo_original>
